<compile_context>
chip_gen: v7x
topology: tpu7x:2x2x1
jax: 0.10.0
libtpu: 0.0.40
codegen_flags: <defaults>
</compile_context>

<pallas_src>
import jax
import jax.numpy as jnp
from jax.experimental import pallas as pl
from jax.experimental.pallas import tpu as pltpu

LANES = 128
SUBLANES = 8
MAX_BLOCK_ROWS = 4096      # (4096, 128) f32 = 2 MiB per stream per grid step


def _round_up(a, b):
    return ((a + b - 1) // b) * b


def _num_tensorcores():
    """Best-effort TensorCores-per-chip query (2 on v7x, 1 on v5e/v6e)."""
    try:
        info = pltpu.get_tpu_info()
        for attr in ("num_cores", "core_count", "num_tensorcores"):
            v = getattr(info, attr, None)
            if isinstance(v, int) and v >= 1:
                return min(v, 2)
    except Exception:
        pass
    try:
        return min(max(int(getattr(jax.devices()[0], "num_cores", 1)), 1), 2)
    except Exception:
        return 1


def _make_bce_kernel(n, block_rows, blocks_per_split, target_is_int, needs_mask):
    """Kernel: accumulate per-split partial sums of BCE-with-logits into o_ref."""

    def kernel(x_ref, t_ref, o_ref):
        c = pl.program_id(0)
        i = pl.program_id(1)

        @pl.when(i == 0)
        def _():
            o_ref[...] = jnp.zeros_like(o_ref)

        x = x_ref[...].astype(jnp.float32)
        if target_is_int:
            # 0/1 labels: select instead of int->f32 sublane unpack + convert + vmul.
            xt = jnp.where(t_ref[...] != 0, x, 0.0)
        else:
            xt = x * t_ref[...].astype(jnp.float32)

        # Numerically stable BCE with logits:
        #   loss = max(x, 0) - x*t + log1p(exp(-|x|))
        # TODO(synk): if EUP ever binds on v6e/v7x, compute the log1p(exp(-|x|))
        # term in bf16 (gated off on v5e which has no bf16 EUP).
        per_elem = jnp.maximum(x, 0.0) - xt + jnp.log1p(jnp.exp(-jnp.abs(x)))

        if needs_mask:
            # Zero out the ragged tail: padded elements of the last lane-row,
            # out-of-bounds rows of the ragged final block, and dead blocks of
            # an uneven split.  (Assumes n < 2**31 so int32 indices suffice.)
            gb = c * blocks_per_split + i                 # unclamped global block id
            base = gb * (block_rows * LANES)
            row = jax.lax.broadcasted_iota(jnp.int32, (block_rows, LANES), 0)
            lane = jax.lax.broadcasted_iota(jnp.int32, (block_rows, LANES), 1)
            elem = base + row * LANES + lane
            per_elem = jnp.where(elem < n, per_elem, 0.0)

        if block_rows % SUBLANES == 0:
            # Fold rows into a vreg-shaped (8, 128) partial; the single
            # cross-lane reduce happens once, outside the kernel.
            partial = per_elem.reshape(-1, SUBLANES, LANES).sum(axis=0)
        else:
            # Tiny input (< 8 rows): the block itself is the accumulator shape.
            partial = per_elem
        o_ref[...] += partial[None, :, :]

    return kernel


def binary_cross_entropy(y_logits, y_target):
    """Matches BinaryCrossEntropy.forward (reduction='mean', weight=None)."""
    # TODO(synk): only reduction='mean' with weight=None (module defaults) implemented.
    if y_target.shape != y_logits.shape:
        if y_logits.shape[1] != 1:
            raise ValueError(
                f"[BinaryCrossEntropy] expected C=1, got C={y_logits.shape[1]}")
        y_target = jnp.expand_dims(y_target, 1)

    n = int(y_logits.size)
    if n == 0:
        # torch's mean over an empty tensor is NaN.
        return jnp.array(jnp.nan, dtype=jnp.float32)

    # Stream native dtypes; all casting happens inside the kernel.
    x = y_logits.reshape(-1)
    t = y_target.reshape(-1)
    if t.dtype == jnp.bool_:
        t = t.astype(jnp.int8)          # bool refs are awkward on TPU; 1 B/elem stream
    target_is_int = not jnp.issubdtype(t.dtype, jnp.floating)

    # --- lane-dense tiling ---------------------------------------------------
    rows = pl.cdiv(n, LANES)
    pad = rows * LANES - n
    if pad:
        # Only when n % 128 != 0: align to a single lane-row (pad < 128 elems);
        # the padded tail is masked in-kernel.
        x = jnp.pad(x, (0, pad))
        t = jnp.pad(t, (0, pad))
    x2 = x.reshape(rows, LANES)
    t2 = t.reshape(rows, LANES)

    num_splits = _num_tensorcores()
    if rows < SUBLANES:
        block_rows = rows                               # full (tiny) extent
    else:
        block_rows = min(MAX_BLOCK_ROWS,
                         _round_up(pl.cdiv(rows, num_splits), SUBLANES),
                         (rows // SUBLANES) * SUBLANES)  # keep block <= rows
    blocks_total = pl.cdiv(rows, block_rows)
    num_splits = min(num_splits, blocks_total)
    blocks_per_split = pl.cdiv(blocks_total, num_splits)
    overshoot = num_splits * blocks_per_split > blocks_total
    needs_mask = (num_splits * blocks_per_split * block_rows * LANES) != n
    acc_rows = SUBLANES if block_rows % SUBLANES == 0 else block_rows

    def in_map(c, i):
        b = c * blocks_per_split + i
        if overshoot:
            # Dead blocks of an uneven split re-read the last real block and are
            # fully masked in-kernel (elem index >= n).
            b = jnp.minimum(b, blocks_total - 1)
        return (b, 0)

    kernel = _make_bce_kernel(n, block_rows, blocks_per_split,
                              target_is_int, needs_mask)

    cost = pl.CostEstimate(
        flops=6 * n,
        transcendentals=2 * n,
        bytes_accessed=n * (x2.dtype.itemsize + t2.dtype.itemsize)
        + num_splits * acc_rows * LANES * 4,
    )

    partials = pl.pallas_call(
        kernel,
        out_shape=jax.ShapeDtypeStruct((num_splits, acc_rows, LANES), jnp.float32),
        grid_spec=pltpu.PrefetchScalarGridSpec(
            num_scalar_prefetch=0,
            grid=(num_splits, blocks_per_split),
            in_specs=[
                pl.BlockSpec((block_rows, LANES), in_map),
                pl.BlockSpec((block_rows, LANES), in_map),
            ],
            out_specs=pl.BlockSpec((1, acc_rows, LANES), lambda c, i: (c, 0, 0)),
        ),
        compiler_params=pltpu.CompilerParams(
            # TODO(synk): on v7x confirm "parallel" shards the leading axis across
            # both TensorCores (else switch to pltpu.CORE_PARALLEL).
            dimension_semantics=("parallel", "arbitrary"),
            vmem_limit_bytes=32 * 1024 * 1024,
        ),
        cost_estimate=cost,
    )(x2, t2)

    total = jnp.sum(partials, dtype=jnp.float32)
    return total / n


def _reference(y_logits, y_target):
    if y_target.shape != y_logits.shape:
        y_target = jnp.expand_dims(y_target, 1)
    x = y_logits.astype(jnp.float32)
    t = y_target.astype(jnp.float32)
    loss = jnp.maximum(x, 0.0) - x * t + jnp.log1p(jnp.exp(-jnp.abs(x)))
    return jnp.mean(loss)


if __name__ == "__main__":
    key = jax.random.PRNGKey(0)
    k1, k2, k3, k4, k5, k6 = jax.random.split(key, 6)

    # Main case: [B, 1, H, W] logits vs [B, H, W] int labels (module's shape path).
    B, H, W = 2, 16, 16
    y_logits = jax.random.normal(k1, (B, 1, H, W), dtype=jnp.float32)
    y_target = (jax.random.uniform(k2, (B, H, W)) > 0.5).astype(jnp.int32)
    loss = binary_cross_entropy(y_logits, y_target)
    jax.block_until_ready(loss)
    ref = _reference(y_logits, y_target)
    assert jnp.allclose(loss, ref, rtol=1e-5, atol=1e-5), (loss, ref)

    # Unaligned size (exercises in-kernel tail masking), int labels.
    y_logits2 = jax.random.normal(k3, (2, 1, 13, 17), dtype=jnp.float32)
    y_target2 = (jax.random.uniform(k4, (2, 13, 17)) > 0.5).astype(jnp.int32)
    loss2 = binary_cross_entropy(y_logits2, y_target2)
    jax.block_until_ready(loss2)
    ref2 = _reference(y_logits2, y_target2)
    assert jnp.allclose(loss2, ref2, rtol=1e-5, atol=1e-5), (loss2, ref2)

    # bf16 logits with matching-shape soft float targets (native-dtype streaming).
    y_logits3 = jax.random.normal(k5, (4, 1, 8, 8), dtype=jnp.bfloat16)
    y_target3 = jax.random.uniform(k6, (4, 1, 8, 8), dtype=jnp.float32)
    loss3 = binary_cross_entropy(y_logits3, y_target3)
    jax.block_until_ready(loss3)
    ref3 = _reference(y_logits3, y_target3)
    assert jnp.allclose(loss3, ref3, rtol=1e-5, atol=1e-5), (loss3, ref3)

    print("KERNEL_OK")
</pallas_src>

<mosaic_0001>
module attributes {stable_mosaic.version = 11 : i64} {
  func.func @kernel(%arg0: i32, %arg1: i32, %arg2: memref<4x128xf32, #tpu.memory_space<vmem>>, %arg3: memref<4x128xi32, #tpu.memory_space<vmem>>, %arg4: memref<1x4x128xf32, #tpu.memory_space<vmem>>) attributes {dimension_semantics = [#tpu.dimension_semantics<parallel>, #tpu.dimension_semantics<arbitrary>], iteration_bounds = array<i64: 1, 1>, scalar_prefetch = 0 : i64, scratch_operands = 0 : i64, tpu.core_type = #tpu.core_type<tc>, window_params = [{transform_indices = @transform_0, window_bounds = array<i64: 4, 128>}, {transform_indices = @transform_1, window_bounds = array<i64: 4, 128>}, {transform_indices = @transform_2, window_bounds = array<i64: 1, 4, 128>}]} {
    %c0_i32 = arith.constant 0 : i32
    %0 = arith.cmpi eq, %arg1, %c0_i32 : i32
    %1 = arith.extui %0 : i1 to i32
    %c0_i32_0 = arith.constant 0 : i32
    %2 = arith.cmpi ne, %1, %c0_i32_0 : i32
    scf.if %2 {
      %cst_13 = arith.constant 0.000000e+00 : f32
      %22 = vector.broadcast %cst_13 : f32 to vector<1x4x128xf32>
      %c0_14 = arith.constant 0 : index
      %c0_15 = arith.constant 0 : index
      %c0_16 = arith.constant 0 : index
      %23 = vector.load %arg4[%c0_14, %c0_15, %c0_16] : memref<1x4x128xf32, #tpu.memory_space<vmem>>, vector<1x4x128xf32>
      tpu.vector_store %arg4[%c0_14, %c0_15, %c0_16], %22 {strides = array<i32>} : memref<1x4x128xf32, #tpu.memory_space<vmem>>, vector<1x4x128xf32>,
    } else {
    }
    %c0 = arith.constant 0 : index
    %c0_1 = arith.constant 0 : index
    %3 = vector.load %arg2[%c0, %c0_1] : memref<4x128xf32, #tpu.memory_space<vmem>>, vector<4x128xf32>
    %c0_2 = arith.constant 0 : index
    %c0_3 = arith.constant 0 : index
    %4 = vector.load %arg3[%c0_2, %c0_3] : memref<4x128xi32, #tpu.memory_space<vmem>>, vector<4x128xi32>
    %c0_i32_4 = arith.constant 0 : i32
    %5 = vector.broadcast %c0_i32_4 : i32 to vector<4x128xi32>
    %6 = arith.cmpi ne, %4, %5 : vector<4x128xi32>
    %cst = arith.constant 0.000000e+00 : f32
    %7 = vector.broadcast %cst : f32 to vector<4x128xf32>
    %8 = arith.select %6, %3, %7 : vector<4x128xi1>, vector<4x128xf32>
    %cst_5 = arith.constant 0.000000e+00 : f32
    %9 = vector.broadcast %cst_5 : f32 to vector<4x128xf32>
    %10 = arith.maximumf %3, %9 : vector<4x128xf32>
    %11 = arith.subf %10, %8 : vector<4x128xf32>
    %12 = math.absf %3 : vector<4x128xf32>
    %cst_6 = arith.constant 0.000000e+00 : f32
    %13 = vector.broadcast %cst_6 : f32 to vector<4x128xf32>
    %14 = arith.subf %13, %12 : vector<4x128xf32>
    %15 = math.exp %14 : vector<4x128xf32>
    %16 = math.log1p %15 : vector<4x128xf32>
    %17 = arith.addf %11, %16 : vector<4x128xf32>
    %c0_7 = arith.constant 0 : index
    %c0_8 = arith.constant 0 : index
    %c0_9 = arith.constant 0 : index
    %18 = vector.load %arg4[%c0_7, %c0_8, %c0_9] : memref<1x4x128xf32, #tpu.memory_space<vmem>>, vector<1x4x128xf32>
    %19 = vector.shape_cast %17 : vector<4x128xf32> to vector<1x4x128xf32>
    %20 = arith.addf %18, %19 : vector<1x4x128xf32>
    %c0_10 = arith.constant 0 : index
    %c0_11 = arith.constant 0 : index
    %c0_12 = arith.constant 0 : index
    %21 = vector.load %arg4[%c0_10, %c0_11, %c0_12] : memref<1x4x128xf32, #tpu.memory_space<vmem>>, vector<1x4x128xf32>
    tpu.vector_store %arg4[%c0_10, %c0_11, %c0_12], %20 {strides = array<i32>} : memref<1x4x128xf32, #tpu.memory_space<vmem>>, vector<1x4x128xf32>,
    return
  }
  func.func @transform_0(%arg0: i32, %arg1: i32) -> (i32, i32) {
    %c1_i32 = arith.constant 1 : i32
    %0 = arith.muli %arg0, %c1_i32 : i32
    %1 = arith.addi %0, %arg1 : i32
    %c0_i32 = arith.constant 0 : i32
    %c0_i32_0 = arith.constant 0 : i32
    return %1, %c0_i32 : i32, i32
  }
  func.func @transform_1(%arg0: i32, %arg1: i32) -> (i32, i32) {
    %c1_i32 = arith.constant 1 : i32
    %0 = arith.muli %arg0, %c1_i32 : i32
    %1 = arith.addi %0, %arg1 : i32
    %c0_i32 = arith.constant 0 : i32
    %c0_i32_0 = arith.constant 0 : i32
    return %1, %c0_i32 : i32, i32
  }
  func.func @transform_2(%arg0: i32, %arg1: i32) -> (i32, i32, i32) {
    %c0_i32 = arith.constant 0 : i32
    %c0_i32_0 = arith.constant 0 : i32
    %c0_i32_1 = arith.constant 0 : i32
    return %arg0, %c0_i32, %c0_i32_0 : i32, i32, i32
  }
}

</mosaic_0001>

<llo_original>
// kernel: tpu_custom_call.1
$region0: #{tpu_custom_call.1}
  #allocation0 [shape = 'u32[]', space=smem, size = 0x4, offset = 0x4, fixed_abs, tag = 'smem constant byte address 0x4 - core index']
  #allocation1 [shape = 'u32[144,128]{1,0:T(1,128)}', space=vmem, size = 0x12000, scoped, tag = 'internal scratch']
  %s0 = inlined_call_operand.hbm [shape: f32[4,128], index: 0, kind: input, shape index: {}]
  %s1 = inlined_call_operand.hbm [shape: s32[4,128], index: 1, kind: input, shape index: {}]
  %s2 = inlined_call_operand.hbm [shape: f32[1,4,128], index: 2, kind: output, shape index: {}]
  %s3 = sld [smem:[#allocation0]]
  $region30: #{tpu_custom_call.1} parent=0
    _
  %s5 = ssub.s32 1, %s3
  %s6 = scalar_select 0, %s5, %s3
  $region1: #{tpu_custom_call.1} parent=0
    #allocation2 [shape = 'u8[2048]{0}', space=vmem, size = 0x800, scoped, tag = 'input window, operand 0, single buffered']
    #allocation3 [shape = 's32[1]{0}', space=sflag, size = 0x4, scoped, tag = 'scoped memory for tpu_custom_call.1']
    #allocation4 [shape = 's32[1]{0}', space=sflag, size = 0x4, scoped, tag = 'scoped memory for tpu_custom_call.1']
    #allocation5 [shape = 'u8[2048]{0}', space=vmem, size = 0x800, scoped, tag = 'input window, operand 1, single buffered']
    #allocation6 [shape = 's32[1]{0}', space=sflag, size = 0x4, scoped, tag = 'scoped memory for tpu_custom_call.1']
    #allocation7 [shape = 'u8[2048]{0}', space=vmem, size = 0x800, scoped, tag = 'output window, operand 0, single buffered']
    %7 = vsyncpa [#allocation3], 0
    %8 = vsyncpa [#allocation6], 0
    %9 = vsyncpa [#allocation4], 0
    // Predicated region
    $region2: #{tpu_custom_call.1} parent=1 // pred_check
      _
    $region3: #{tpu_custom_call.1} parent=1 // pred_check_branch
      %11 = sbr.rel (0) target = $region5
    $region4: #{tpu_custom_call.1} parent=1 // pred_region
      %s12 = sadd.s32 0, 0
      %s14 = ssub.s32 64, 64
      %15 = vsyncadd [#allocation3], %s14
      %s16 = smul.addr %s12, 64
      %s17 = scalar_lea.hbm %s0, %s16
      %s19 = sshll.u32 [#allocation2], 4
      %s20 = int_to_ptr.vmem [resolvable:$true] %s19
      %22 = dma.hbm_to_vmem [thread:$0]  %s17, 64, %s20, [#allocation3]
    $region5: #{tpu_custom_call.1} parent=1 // pred_fallthru
      _
    // Predicated region
    $region6: #{tpu_custom_call.1} parent=1 // pred_check
      _
    $region7: #{tpu_custom_call.1} parent=1 // pred_check_branch
      %24 = sbr.rel (0) target = $region9
    $region8: #{tpu_custom_call.1} parent=1 // pred_region
      %s25 = sadd.s32 0, 0
      %s27 = ssub.s32 64, 64
      %28 = vsyncadd [#allocation6], %s27
      %s29 = smul.addr %s25, 64
      %s30 = scalar_lea.hbm %s1, %s29
      %s32 = sshll.u32 [#allocation5], 4
      %s33 = int_to_ptr.vmem [resolvable:$true] %s32
      %35 = dma.hbm_to_vmem [thread:$0]  %s30, 64, %s33, [#allocation6]
    $region9: #{tpu_custom_call.1} parent=1 // pred_fallthru
      _
    // Predicated region
    $region10: #{tpu_custom_call.1} parent=1 // pred_check
      _
    $region11: #{tpu_custom_call.1} parent=1 // pred_check_branch
      %37 = sbr.rel (0) target = $region13
    $region12: #{tpu_custom_call.1} parent=1 // pred_region
      %38 = dma.done [#allocation3], 64
    $region13: #{tpu_custom_call.1} parent=1 // pred_fallthru
      _
    // Predicated region
    $region14: #{tpu_custom_call.1} parent=1 // pred_check
      _
    $region15: #{tpu_custom_call.1} parent=1 // pred_check_branch
      %40 = sbr.rel (0) target = $region17
    $region16: #{tpu_custom_call.1} parent=1 // pred_region
      %41 = dma.done [#allocation6], 64
    $region17: #{tpu_custom_call.1} parent=1 // pred_fallthru
      _
    %s42 = sadd.s32 0, 0
    %s43 = sadd.s32 0, 0
    %p44 = scmp.eq.s32.totalorder 0, 0
    // Predicated region
    $region18: #{tpu_custom_call.1} parent=1 // pred_check
      %p45 = pneg %p44
    $region19: #{tpu_custom_call.1} parent=1 // pred_check_branch
      %47 = sbr.rel (%p45) target = $region21
    $region20: #{tpu_custom_call.1} parent=1 // pred_region
      %48 = vst [vmem:[#allocation7] sm:$0xf] 0.0
    $region21: #{tpu_custom_call.1} parent=1 // pred_fallthru
      _
    %v49 = vld [vmem:[#allocation2] sm:$0xf]
    %v50 = vld [vmem:[#allocation5] sm:$0xf]
    %vm51 = vcmp.ne.s32.totalorder %v50, 0
    %v52 = vsel %vm51, %v49, 0.0
    %v53 = vmax.f32 %v49, 0.0
    %v54 = vsub.f32 %v53, %v52
    %v55 = vand.u32 2147483647, %v49
    %v56 = vsub.f32 0.0, %v55
    %v57 = vmul.f32 %v56, 1.442695
    %v58 = vpow.pop %v57
    %v59 = vadd.f32 %v58, 1.0
    %v60 = vlog2.pop %v59
    %v61 = vmul.f32 %v60, 0.6931472
    %v62 = vmul.f32 -0.5, %v58
    %v63 = vadd.f32 %v62, 1.0
    %v64 = vmul.f32 %v63, %v58
    %v65 = vand.u32 2147483647, %v58
    %vm66 = vcmp.lt.f32.partialorder %v65, 0.0004427343
    %v67 = vsel %vm66, %v64, %v61
    %v68 = vadd.f32 %v54, %v67
    %v69 = vld [vmem:[#allocation7] sm:$0xf]
    %v70 = vadd.f32 %v69, %v68
    %71 = vst [vmem:[#allocation7] sm:$0xf] %v70
    // Predicated region
    $region22: #{tpu_custom_call.1} parent=1 // pred_check
      _
    $region23: #{tpu_custom_call.1} parent=1 // pred_check_branch
      %73 = sbr.rel (0) target = $region25
    $region24: #{tpu_custom_call.1} parent=1 // pred_region
      %s75 = ssub.s32 64, 64
      %76 = vsyncadd [#allocation4], %s75
      %s78 = sshll.u32 [#allocation7], 4
      %s79 = int_to_ptr.vmem [resolvable:$true] %s78
      %81 = dma.vmem_to_hbm [thread:$0]  %s79, 64, %s2, [#allocation4]
    $region25: #{tpu_custom_call.1} parent=1 // pred_fallthru
      _
    // Predicated region
    $region26: #{tpu_custom_call.1} parent=1 // pred_check
      _
    $region27: #{tpu_custom_call.1} parent=1 // pred_check_branch
      %83 = sbr.rel (0) target = $region29
    $region28: #{tpu_custom_call.1} parent=1 // pred_region
      %84 = dma.done [#allocation4], 64
    $region29: #{tpu_custom_call.1} parent=1 // pred_fallthru
      _
    %85 = vsyncpa [#allocation3], 1
    %86 = vsyncpa [#allocation6], 1
    %87 = vsyncpa [#allocation4], 1

</llo_original>
